<compile_context>
chip_gen: v6e
topology: v6e:2x2x1
jax: 0.10.0
libtpu: 0.0.40
codegen_flags: <defaults>
</compile_context>

<pallas_src>
import functools
import math

import jax
import jax.numpy as jnp
from jax import lax
from jax.experimental import pallas as pl
from jax.experimental.pallas import tpu as pltpu


_FMIX_C1 = -2048144789  # int32 bit-pattern of 0x85EBCA6B
_FMIX_C2 = -1028477387  # int32 bit-pattern of 0xC2B2AE35


def _fmix32(h):
    """murmur3 finalizer on int32 (logical shifts emulated by masking after arithmetic shift)."""
    h = h ^ ((h >> 16) & jnp.int32(0xFFFF))
    h = h * jnp.int32(_FMIX_C1)
    h = h ^ ((h >> 13) & jnp.int32(0x7FFFF))
    h = h * jnp.int32(_FMIX_C2)
    h = h ^ ((h >> 16) & jnp.int32(0xFFFF))
    return h


def _pos_encoder_kernel(seed_ref, x_ref, pe_ref, o_ref, *, dropout_p, training, npos, nmodel):
    # x_ref / o_ref: (TB, TP, nmodel) tiles; pe_ref: (TP, nmodel), shared across the batch axis.
    # Add in f32, cast once at the store (avoids bf16 scale-rounding error in the dropout path).
    y = x_ref[...].astype(jnp.float32) + pe_ref[...].astype(jnp.float32)[None, :, :]

    if training and dropout_p > 0.0:
        # TODO(synk): torch.nn.Dropout's exact RNG stream cannot be reproduced; this uses a
        # deterministic counter-hash with identical keep-probability / 1/(1-p) scaling.
        tb, tp, nm = x_ref.shape
        b0 = pl.program_id(1) * tb            # first batch element covered by this block
        p0 = pl.program_id(0) * tp            # first position covered by this block
        shape = (tb, tp, nm)
        bi = lax.broadcasted_iota(jnp.int32, shape, 0) + b0
        pi = lax.broadcasted_iota(jnp.int32, shape, 1) + p0
        ci = lax.broadcasted_iota(jnp.int32, shape, 2)
        ctr = (bi * npos + pi) * nmodel + ci              # global element id (wraps mod 2^32, fine)
        h = _fmix32(_fmix32(ctr) ^ seed_ref[0])           # tiling-invariant per-element bits
        # keep with prob (1 - p): h is ~uniform over int32, keep iff h >= p*2^32 - 2^31.
        thr = min(int(round(float(dropout_p) * float(1 << 32))), (1 << 32) - 1) - (1 << 31)
        keep = h >= jnp.int32(thr)
        scale = 1.0 / (1.0 - float(dropout_p))
        y = jnp.where(keep, y * scale, 0.0)               # scale applied in f32

    o_ref[...] = y.astype(o_ref.dtype)


def pos_encoder(x, pe, *, dropout_p=0.1, training=False, seed=0,
                target_tile_bytes=4 * 1024 * 1024):
    """x: [B, npos, nmodel], pe: [npos, nmodel].  Returns dropout(x + pe, p)."""
    B, npos, nmodel = x.shape
    assert pe.shape == (npos, nmodel), (pe.shape, (npos, nmodel))

    itemsize = jnp.dtype(x.dtype).itemsize
    sublane = {4: 8, 2: 16, 1: 32}.get(itemsize, 8)
    slab_bytes = npos * nmodel * itemsize          # one batch element's (npos, nmodel) plane

    if slab_bytes <= target_tile_bytes:
        # Small-shape path: whole npos per block; fold batch elements into the block so each
        # grid step streams ~target_tile_bytes instead of a tiny slab.
        TP, n_tiles = npos, 1
        TB = max(1, min(B, target_tile_bytes // max(slab_bytes, 1)))
        while B % TB:                              # full batch blocks -> no masked stores
            TB -= 1
    else:
        # Large-npos path: one batch element per block, npos tiled in ~target-sized slabs.
        TB = 1
        row_bytes = nmodel * itemsize
        TP = max(sublane, (target_tile_bytes // row_bytes) // sublane * sublane)
        TP = min(TP, npos)
        tp = TP                                    # prefer a TP that divides npos exactly
        while tp > sublane and npos % tp:
            tp -= sublane
        if npos % tp == 0 and tp * 2 >= TP:        # only take the divisor if it stays big
            TP = tp
        n_tiles = pl.cdiv(npos, TP)
    nb = B // TB

    # VMEM budget: double-buffered x-in + x-out tiles, double-buffered pe tile, plus slack.
    x_tile_bytes = TB * TP * nmodel * itemsize
    pe_tile_bytes = TP * nmodel * jnp.dtype(pe.dtype).itemsize
    footprint = 4 * x_tile_bytes + 2 * pe_tile_bytes + (4 << 20)
    vmem_limit = int(min(max(footprint, 16 << 20), 48 << 20))

    kernel = functools.partial(
        _pos_encoder_kernel, dropout_p=float(dropout_p), training=bool(training),
        npos=npos, nmodel=nmodel)
    seed_arr = jnp.asarray([seed], dtype=jnp.int32)

    return pl.pallas_call(
        kernel,
        out_shape=jax.ShapeDtypeStruct((B, npos, nmodel), x.dtype),
        grid_spec=pltpu.PrefetchScalarGridSpec(
            num_scalar_prefetch=1,                 # dropout seed lands in SMEM
            grid=(n_tiles, nb),                    # npos tiles OUTER, batch blocks INNER
            in_specs=[
                pl.BlockSpec((TB, TP, nmodel), lambda t, b, sref: (b, t, 0)),
                pl.BlockSpec((TP, nmodel), lambda t, b, sref: (t, 0)),   # pe stays resident
            ],
            out_specs=pl.BlockSpec((TB, TP, nmodel), lambda t, b, sref: (b, t, 0)),
        ),
        compiler_params=pltpu.CompilerParams(
            dimension_semantics=("parallel", "parallel"),
            vmem_limit_bytes=vmem_limit,
        ),
    )(seed_arr, x, pe)


def make_pe_table(npos: int, nmodel: int, dtype=jnp.float32) -> jnp.ndarray:
    """Sinusoidal positional-encoding buffer (same math as posEncoder.__init__; even nmodel)."""
    position = jnp.arange(npos, dtype=jnp.float32)[:, None]                       # (npos, 1)
    div_term = jnp.exp(
        jnp.arange(0, nmodel, 2, dtype=jnp.float32) * (-math.log(10000.0) / float(nmodel)))
    angles = position * div_term                                                  # (npos, nmodel//2)
    # interleave: even columns = sin, odd columns = cos
    pe = jnp.stack([jnp.sin(angles), jnp.cos(angles)], axis=-1).reshape(npos, nmodel)
    return pe.astype(dtype)   # cast once at table-build time (no per-call cast in pos_encoder)


if __name__ == "__main__":
    # Small, lane-dense shapes (nmodel multiple of 128 keeps stores unmasked).
    B, npos, nmodel = 2, 64, 128

    key = jax.random.PRNGKey(0)
    x = jax.random.normal(key, (B, npos, nmodel), dtype=jnp.float32)
    pe = make_pe_table(npos, nmodel, dtype=x.dtype)
    ref = x + pe[None, :, :]

    # Eval mode (dropout is identity): bit-exact check, batch-folded small-shape path.
    y = jax.block_until_ready(pos_encoder(x, pe, dropout_p=0.1, training=False))
    assert y.shape == (B, npos, nmodel)
    assert jnp.allclose(y, ref, atol=1e-6, rtol=1e-6)

    # Eval mode again, forcing the npos-tiled (large-sequence) path with a tiny tile target.
    y2 = jax.block_until_ready(
        pos_encoder(x, pe, dropout_p=0.1, training=False, target_tile_bytes=16 * 1024))
    assert jnp.allclose(y2, ref, atol=1e-6, rtol=1e-6)

    # Training mode: every element is either 0 or (x+pe)/(1-p); drop fraction ~= p.
    p = 0.1
    yt = jax.block_until_ready(pos_encoder(x, pe, dropout_p=p, training=True, seed=1234))
    scaled = ref / (1.0 - p)
    ok = jnp.logical_or(yt == 0.0, jnp.isclose(yt, scaled, atol=1e-5, rtol=1e-5))
    assert bool(jnp.all(ok))
    drop_frac = float(jnp.mean((yt == 0.0).astype(jnp.float32)))
    assert 0.02 < drop_frac < 0.25, drop_frac

    print("KERNEL_OK")
</pallas_src>

<mosaic_0001>
module attributes {stable_mosaic.version = 11 : i64} {
  func.func @_pos_encoder_kernel(%arg0: i32, %arg1: i32, %arg2: memref<1xi32, #tpu.memory_space<smem>>, %arg3: memref<2x64x128xf32, #tpu.memory_space<vmem>>, %arg4: memref<64x128xf32, #tpu.memory_space<vmem>>, %arg5: memref<2x64x128xf32, #tpu.memory_space<vmem>>) attributes {dimension_semantics = [#tpu.dimension_semantics<parallel>, #tpu.dimension_semantics<parallel>], iteration_bounds = array<i64: 1, 1>, scalar_prefetch = 1 : i64, scratch_operands = 0 : i64, tpu.core_type = #tpu.core_type<tc>, window_params = [{transform_indices = @transform_0, window_bounds = array<i64: 2, 64, 128>}, {transform_indices = @transform_1, window_bounds = array<i64: 64, 128>}, {transform_indices = @transform_2, window_bounds = array<i64: 2, 64, 128>}]} {
    %c0 = arith.constant 0 : index
    %c0_0 = arith.constant 0 : index
    %c0_1 = arith.constant 0 : index
    %0 = vector.load %arg3[%c0, %c0_0, %c0_1] : memref<2x64x128xf32, #tpu.memory_space<vmem>>, vector<2x64x128xf32>
    %c0_2 = arith.constant 0 : index
    %c0_3 = arith.constant 0 : index
    %1 = vector.load %arg4[%c0_2, %c0_3] : memref<64x128xf32, #tpu.memory_space<vmem>>, vector<64x128xf32>
    %2 = vector.shape_cast %1 : vector<64x128xf32> to vector<1x64x128xf32>
    %3 = vector.broadcast %2 : vector<1x64x128xf32> to vector<2x64x128xf32>
    %4 = arith.addf %0, %3 : vector<2x64x128xf32>
    %c0_4 = arith.constant 0 : index
    %c0_5 = arith.constant 0 : index
    %c0_6 = arith.constant 0 : index
    %5 = vector.load %arg5[%c0_4, %c0_5, %c0_6] : memref<2x64x128xf32, #tpu.memory_space<vmem>>, vector<2x64x128xf32>
    tpu.vector_store %arg5[%c0_4, %c0_5, %c0_6], %4 {strides = array<i32>} : memref<2x64x128xf32, #tpu.memory_space<vmem>>, vector<2x64x128xf32>,
    return
  }
  func.func @transform_0(%arg0: i32, %arg1: i32, %arg2: memref<1xi32, #tpu.memory_space<smem>>) -> (i32, i32, i32) {
    %c0_i32 = arith.constant 0 : i32
    %c0_i32_0 = arith.constant 0 : i32
    return %arg1, %arg0, %c0_i32 : i32, i32, i32
  }
  func.func @transform_1(%arg0: i32, %arg1: i32, %arg2: memref<1xi32, #tpu.memory_space<smem>>) -> (i32, i32) {
    %c0_i32 = arith.constant 0 : i32
    %c0_i32_0 = arith.constant 0 : i32
    return %arg0, %c0_i32 : i32, i32
  }
  func.func @transform_2(%arg0: i32, %arg1: i32, %arg2: memref<1xi32, #tpu.memory_space<smem>>) -> (i32, i32, i32) {
    %c0_i32 = arith.constant 0 : i32
    %c0_i32_0 = arith.constant 0 : i32
    return %arg1, %arg0, %c0_i32 : i32, i32, i32
  }
}

</mosaic_0001>

<llo_original>
// kernel: tpu_custom_call.1
$region0: #{tpu_custom_call.1}
  #allocation0 [shape = 'u32[]', space=smem, size = 0x4, offset = 0x4, fixed_abs, tag = 'smem constant byte address 0x4 - core index']
  #allocation1 [shape = 'u32[144,128]{1,0:T(1,128)}', space=vmem, size = 0x12000, scoped, tag = 'internal scratch']
  #allocation2 [shape = 's32[1]{0}', space=sflag, size = 0x4, scoped, tag = 'scoped memory for tpu_custom_call.1']
  #allocation3 [shape = 's32[1]{0:T(128)S(6)}', space=smem, size = 0x200, scoped, tag = 'prefetched SMEM operand 0']
  %s0 = inlined_call_operand.<no memory space> [shape: s32[1], index: 0, kind: input, shape index: {}]
  %s1 = inlined_call_operand.hbm [shape: f32[2,64,128], index: 1, kind: input, shape index: {}]
  %s2 = inlined_call_operand.hbm [shape: f32[64,128], index: 2, kind: input, shape index: {}]
  %s3 = inlined_call_operand.hbm [shape: f32[2,64,128], index: 3, kind: output, shape index: {}]
  %s4 = sld [smem:[#allocation0]]
  $region26: #{tpu_custom_call.1} parent=0
    _
  %s6 = ssub.s32 1, %s4
  %s7 = scalar_select 0, %s6, %s4
  %8 = sst [smem:[#allocation3]] %s0
  $region1: #{tpu_custom_call.1} parent=0
    #allocation4 [shape = 'u8[65536]{0}', space=vmem, size = 0x10000, scoped, tag = 'input window, operand 1, single buffered']
    #allocation5 [shape = 's32[1]{0}', space=sflag, size = 0x4, scoped, tag = 'scoped memory for tpu_custom_call.1']
    #allocation6 [shape = 's32[1]{0}', space=sflag, size = 0x4, scoped, tag = 'scoped memory for tpu_custom_call.1']
    #allocation7 [shape = 'u8[32768]{0}', space=vmem, size = 0x8000, scoped, tag = 'input window, operand 2, single buffered']
    #allocation8 [shape = 's32[1]{0}', space=sflag, size = 0x4, scoped, tag = 'scoped memory for tpu_custom_call.1']
    #allocation9 [shape = 'u8[65536]{0}', space=vmem, size = 0x10000, scoped, tag = 'output window, operand 0, single buffered']
    %9 = vsyncpa [#allocation5], 0
    %10 = vsyncpa [#allocation8], 0
    %11 = vsyncpa [#allocation6], 0
    // Predicated region
    $region2: #{tpu_custom_call.1} parent=1 // pred_check
      _
    $region3: #{tpu_custom_call.1} parent=1 // pred_check_branch
      %13 = sbr.rel (0) target = $region5
    $region4: #{tpu_custom_call.1} parent=1 // pred_region
      %s15 = ssub.s32 2048, 2048
      %16 = vsyncadd [#allocation5], %s15
      %s17 = sshll.u32 [#allocation4], 4
      %s18 = int_to_ptr.vmem [resolvable:$true] %s17
      %23 = dma.hbm_to_vmem [thread:$0]  %s1, 2048, %s18, [#allocation5], 128, 128, 8
    $region5: #{tpu_custom_call.1} parent=1 // pred_fallthru
      _
    // Predicated region
    $region6: #{tpu_custom_call.1} parent=1 // pred_check
      _
    $region7: #{tpu_custom_call.1} parent=1 // pred_check_branch
      %25 = sbr.rel (0) target = $region9
    $region8: #{tpu_custom_call.1} parent=1 // pred_region
      %s27 = ssub.s32 1024, 1024
      %28 = vsyncadd [#allocation8], %s27
      %s29 = sshll.u32 [#allocation7], 4
      %s30 = int_to_ptr.vmem [resolvable:$true] %s29
      %35 = dma.hbm_to_vmem [thread:$0]  %s2, 1024, %s30, [#allocation8], 128, 128, 8
    $region9: #{tpu_custom_call.1} parent=1 // pred_fallthru
      _
    // Predicated region
    $region10: #{tpu_custom_call.1} parent=1 // pred_check
      _
    $region11: #{tpu_custom_call.1} parent=1 // pred_check_branch
      %37 = sbr.rel (0) target = $region13
    $region12: #{tpu_custom_call.1} parent=1 // pred_region
      %38 = dma.done [#allocation5], 2048
    $region13: #{tpu_custom_call.1} parent=1 // pred_fallthru
      _
    // Predicated region
    $region14: #{tpu_custom_call.1} parent=1 // pred_check
      _
    $region15: #{tpu_custom_call.1} parent=1 // pred_check_branch
      %40 = sbr.rel (0) target = $region17
    $region16: #{tpu_custom_call.1} parent=1 // pred_region
      %41 = dma.done [#allocation8], 1024
    $region17: #{tpu_custom_call.1} parent=1 // pred_fallthru
      _
    %v42 = vld [vmem:[#allocation4] sm:$0xff]
    %v43 = vld [vmem:[#allocation4 + $0x8] sm:$0xff]
    %v44 = vld [vmem:[#allocation4 + $0x10] sm:$0xff]
    %v45 = vld [vmem:[#allocation4 + $0x18] sm:$0xff]
    %v46 = vld [vmem:[#allocation4 + $0x20] sm:$0xff]
    %v47 = vld [vmem:[#allocation4 + $0x28] sm:$0xff]
    %v48 = vld [vmem:[#allocation4 + $0x30] sm:$0xff]
    %v49 = vld [vmem:[#allocation4 + $0x38] sm:$0xff]
    %v50 = vld [vmem:[#allocation4 + $0x40] sm:$0xff]
    %v51 = vld [vmem:[#allocation4 + $0x48] sm:$0xff]
    %v52 = vld [vmem:[#allocation4 + $0x50] sm:$0xff]
    %v53 = vld [vmem:[#allocation4 + $0x58] sm:$0xff]
    %v54 = vld [vmem:[#allocation4 + $0x60] sm:$0xff]
    %v55 = vld [vmem:[#allocation4 + $0x68] sm:$0xff]
    %v56 = vld [vmem:[#allocation4 + $0x70] sm:$0xff]
    %v57 = vld [vmem:[#allocation4 + $0x78] sm:$0xff]
    %v58 = vld [vmem:[#allocation7] sm:$0xff]
    %v59 = vld [vmem:[#allocation7 + $0x8] sm:$0xff]
    %v60 = vld [vmem:[#allocation7 + $0x10] sm:$0xff]
    %v61 = vld [vmem:[#allocation7 + $0x18] sm:$0xff]
    %v62 = vld [vmem:[#allocation7 + $0x20] sm:$0xff]
    %v63 = vld [vmem:[#allocation7 + $0x28] sm:$0xff]
    %v64 = vld [vmem:[#allocation7 + $0x30] sm:$0xff]
    %v65 = vld [vmem:[#allocation7 + $0x38] sm:$0xff]
    %v66 = vadd.f32 %v42, %v58
    %v67 = vadd.f32 %v43, %v59
    %v68 = vadd.f32 %v44, %v60
    %v69 = vadd.f32 %v45, %v61
    %v70 = vadd.f32 %v46, %v62
    %v71 = vadd.f32 %v47, %v63
    %v72 = vadd.f32 %v48, %v64
    %v73 = vadd.f32 %v49, %v65
    %v74 = vadd.f32 %v50, %v58
    %v75 = vadd.f32 %v51, %v59
    %v76 = vadd.f32 %v52, %v60
    %v77 = vadd.f32 %v53, %v61
    %v78 = vadd.f32 %v54, %v62
    %v79 = vadd.f32 %v55, %v63
    %v80 = vadd.f32 %v56, %v64
    %v81 = vadd.f32 %v57, %v65
    %82 = vst [vmem:[#allocation9] sm:$0xff] %v66
    %83 = vst [vmem:[#allocation9 + $0x8] sm:$0xff] %v67
    %84 = vst [vmem:[#allocation9 + $0x10] sm:$0xff] %v68
    %85 = vst [vmem:[#allocation9 + $0x18] sm:$0xff] %v69
    %86 = vst [vmem:[#allocation9 + $0x20] sm:$0xff] %v70
    %87 = vst [vmem:[#allocation9 + $0x28] sm:$0xff] %v71
    %88 = vst [vmem:[#allocation9 + $0x30] sm:$0xff] %v72
    %89 = vst [vmem:[#allocation9 + $0x38] sm:$0xff] %v73
    %90 = vst [vmem:[#allocation9 + $0x40] sm:$0xff] %v74
    %91 = vst [vmem:[#allocation9 + $0x48] sm:$0xff] %v75
    %92 = vst [vmem:[#allocation9 + $0x50] sm:$0xff] %v76
    %93 = vst [vmem:[#allocation9 + $0x58] sm:$0xff] %v77
    %94 = vst [vmem:[#allocation9 + $0x60] sm:$0xff] %v78
    %95 = vst [vmem:[#allocation9 + $0x68] sm:$0xff] %v79
    %96 = vst [vmem:[#allocation9 + $0x70] sm:$0xff] %v80
    %97 = vst [vmem:[#allocation9 + $0x78] sm:$0xff] %v81
    // Predicated region
    $region18: #{tpu_custom_call.1} parent=1 // pred_check
      _
    $region19: #{tpu_custom_call.1} parent=1 // pred_check_branch
      %99 = sbr.rel (0) target = $region21
    $region20: #{tpu_custom_call.1} parent=1 // pred_region
      %s101 = ssub.s32 2048, 2048
      %102 = vsyncadd [#allocation6], %s101
      %s103 = sshll.u32 [#allocation9], 4
      %s104 = int_to_ptr.vmem [resolvable:$true] %s103
      %109 = dma.vmem_to_hbm [thread:$0]  %s104, 2048, %s3, [#allocation6], 128, 128, 8
    $region21: #{tpu_custom_call.1} parent=1 // pred_fallthru
      _
    // Predicated region
    $region22: #{tpu_custom_call.1} parent=1 // pred_check
      _
    $region23: #{tpu_custom_call.1} parent=1 // pred_check_branch
      %111 = sbr.rel (0) target = $region25
    $region24: #{tpu_custom_call.1} parent=1 // pred_region
      %112 = dma.done [#allocation6], 2048
    $region25: #{tpu_custom_call.1} parent=1 // pred_fallthru
      _
    %113 = vsyncpa [#allocation5], 1
    %114 = vsyncpa [#allocation8], 1
    %115 = vsyncpa [#allocation6], 1

</llo_original>
